<compile_context>
chip_gen: v5e
topology: v5e:2x2
jax: 0.10.0
libtpu: 0.0.40
codegen_flags: <defaults>
</compile_context>

<pallas_src>
import functools

import jax
import jax.numpy as jnp
from jax import lax
from jax.experimental import pallas as pl
from jax.experimental.pallas import tpu as pltpu


def _round_up(x, m):
    return (x + m - 1) // m * m


# ---------------------------------------------------------------------------
# Fused Pallas kernel: whole MLP for one batch tile, weights resident in VMEM.
# ---------------------------------------------------------------------------
def _fused_mlp_kernel(x_ref, *refs):
    """refs = [w0, b0, w1, b1, ..., w_cls16, b_cls(SMEM), o_ref].

    Weights are bf16 (BN already folded in, widths padded to 128); biases and
    all epilogue math are f32; matmuls accumulate in f32 on the MXU.
    """
    o_ref = refs[-1]           # (1, 1, TILE_B) f32
    b_cls_ref = refs[-2]       # (1, 1) f32 scalar in SMEM
    w_cls_ref = refs[-3]       # (16, H_pad) bf16, only row 0 is real
    hidden = refs[:-3]
    n_hidden = len(hidden) // 2

    h = x_ref[...].astype(jnp.bfloat16)              # (TILE_B, in_pad) bf16
    for i in range(n_hidden):
        w = hidden[2 * i][...]                       # (K_pad, N_pad) bf16
        b = hidden[2 * i + 1][...]                   # (1, N_pad)     f32
        y = jnp.dot(h, w, preferred_element_type=jnp.float32) + b
        y = jnp.maximum(y, 0.0)                      # ReLU in f32
        # dropout: identity (eval mode) — see TODO(synk) at the top.
        h = y.astype(jnp.bfloat16)

    # Classifier computed transposed (w_row @ h^T) so the batch is on the lane
    # axis: lane-dense (1, TILE_B) store instead of a 128x zero-padded block.
    s = lax.dot_general(w_cls_ref[...], h, (((1,), (1,)), ((), ())),
                        preferred_element_type=jnp.float32)    # (16, TILE_B)
    out_row = s[0:1, :] + b_cls_ref[0, 0]                      # (1, TILE_B)
    o_ref[...] = out_row[None, :, :].astype(o_ref.dtype)


# ---------------------------------------------------------------------------
# Parameter construction (deterministic, PyTorch-style init shapes)
# ---------------------------------------------------------------------------
def init_params(key, in_feats, hidden_sizes):
    params = {"linears": [], "bns": []}
    dims = [in_feats] + list(hidden_sizes)
    for i in range(len(hidden_sizes)):
        fan_in, fan_out = dims[i], dims[i + 1]
        key, kw, kb, km, kv = jax.random.split(key, 5)
        bound = 1.0 / jnp.sqrt(jnp.float32(fan_in))
        w = jax.random.uniform(kw, (fan_in, fan_out), jnp.float32, -bound, bound)
        b = jax.random.uniform(kb, (1, fan_out), jnp.float32, -bound, bound)
        params["linears"].append((w, b))
        # BatchNorm1d: gamma=1, beta=0, deterministic non-trivial running stats.
        gamma = jnp.ones((1, fan_out), jnp.float32)
        beta = jnp.zeros((1, fan_out), jnp.float32)
        running_mean = 0.01 * jax.random.normal(km, (1, fan_out), jnp.float32)
        running_var = 1.0 + 0.1 * jax.random.uniform(kv, (1, fan_out), jnp.float32)
        params["bns"].append((gamma, beta, running_mean, running_var))
    # classifier: hidden_sizes[-1] -> 1
    fan_in = hidden_sizes[-1]
    key, kw, kb = jax.random.split(key, 3)
    bound = 1.0 / jnp.sqrt(jnp.float32(fan_in))
    w = jax.random.uniform(kw, (fan_in, 1), jnp.float32, -bound, bound)
    b = jax.random.uniform(kb, (1, 1), jnp.float32, -bound, bound)
    params["classifier"] = (w, b)
    return params


# ---------------------------------------------------------------------------
# Forward pass: fold BN, pad widths, pick batch tiling, launch one pallas_call.
# ---------------------------------------------------------------------------
@functools.partial(jax.jit, static_argnames=("eps", "single_buffer_weights"))
def mol_pred_dnn_forward(params, x, eps=1e-5, single_buffer_weights=True):
    B, in_feats = x.shape
    apply_bn = B != 1  # reference module skips BatchNorm when batch == 1

    in_pad = _round_up(in_feats, 128)

    # Fold BatchNorm1d (inference/running-stat form) into each Linear and
    # zero-pad every width to a multiple of 128 (full MXU / lane tiles).
    ws, bs = [], []
    k_pad_prev = in_pad
    for (w, b), (gamma, beta, mean, var) in zip(params["linears"], params["bns"]):
        if apply_bn:
            scale = gamma / jnp.sqrt(var + eps)       # (1, N)
            shift = beta - mean * scale               # (1, N)
            w = w * scale
            b = b * scale + shift
        k, n = w.shape
        n_pad = _round_up(n, 128)
        w_p = jnp.zeros((k_pad_prev, n_pad), jnp.float32).at[:k, :n].set(w)
        b_p = jnp.zeros((1, n_pad), jnp.float32).at[:, :n].set(b)
        ws.append(w_p.astype(jnp.bfloat16))
        bs.append(b_p)
        k_pad_prev = n_pad

    # Classifier as a 16-row bf16 operand (sublane packing); row 0 is real.
    w_cls, b_cls = params["classifier"]               # (H, 1), (1, 1)
    h_last = w_cls.shape[0]
    h_pad = k_pad_prev
    w_cls16 = jnp.zeros((16, h_pad), jnp.float32).at[0, :h_last].set(w_cls[:, 0])
    w_cls16 = w_cls16.astype(jnp.bfloat16)
    b_cls = b_cls.astype(jnp.float32)                 # -> SMEM scalar

    # Batch tiling: 128-row-aligned tiles up to 512 rows; keep >= 2 grid steps
    # whenever the batch allows it (v7x has 2 TensorCores per chip).
    chunks = _round_up(B, 128) // 128
    tiles = 1
    if chunks >= 2:
        for t in (4, 3, 2):
            if chunks % t == 0 and chunks // t >= 2:
                tiles = t
                break
    TILE_B = 128 * tiles
    B_pad = _round_up(B, TILE_B)
    grid = (B_pad // TILE_B,)

    if B_pad != B or in_pad != in_feats:
        x = jnp.pad(x, ((0, B_pad - B), (0, in_pad - in_feats)))

    # Resident weights: constant index_map, optionally single-buffered.
    def _resident_spec(shape):
        if single_buffer_weights:
            return pl.BlockSpec(shape, lambda i: (0, 0),
                                pipeline_mode=pl.Buffered(1))
        return pl.BlockSpec(shape, lambda i: (0, 0))

    args = [x]
    in_specs = [pl.BlockSpec((TILE_B, in_pad), lambda i: (i, 0))]
    for w, b in zip(ws, bs):
        args += [w, b]
        in_specs += [_resident_spec(w.shape), _resident_spec(b.shape)]
    args += [w_cls16, b_cls]
    in_specs += [_resident_spec(w_cls16.shape),
                 pl.BlockSpec(memory_space=pltpu.MemorySpace.SMEM)]

    # Explicit VMEM budget: weights (x buffer count) + double-buffered x/out
    # tiles + live activations + margin, capped at 64 MiB (v7x physical).
    n_bufs = 1 if single_buffer_weights else 2
    weight_bytes = sum(w.size * 2 + b.size * 4 for w, b in zip(ws, bs))
    weight_bytes += w_cls16.size * 2
    max_w = max([in_pad] + [int(b.shape[1]) for b in bs])
    act_bytes = TILE_B * max_w * 6                 # f32 y + bf16 h live together
    io_bytes = 2 * TILE_B * in_pad * 4 + 2 * TILE_B * 4
    budget = n_bufs * weight_bytes + io_bytes + 2 * act_bytes + (8 << 20)
    vmem_limit = int(min(64 << 20, max(budget, 32 << 20)))

    out = pl.pallas_call(
        _fused_mlp_kernel,
        out_shape=jax.ShapeDtypeStruct((grid[0], 1, TILE_B), jnp.float32),
        grid=grid,
        in_specs=in_specs,
        out_specs=pl.BlockSpec((1, 1, TILE_B), lambda i: (i, 0, 0)),
        compiler_params=pltpu.CompilerParams(
            dimension_semantics=("parallel",),
            vmem_limit_bytes=vmem_limit,
        ),
    )(*args)
    # out[i, 0, j] is the prediction for batch row i*TILE_B + j.
    return out.reshape(B_pad, 1)[:B]


# ---------------------------------------------------------------------------
# Pure-JAX reference (f32) for a sanity check
# ---------------------------------------------------------------------------
def reference_forward(params, x, eps=1e-5):
    B = x.shape[0]
    for (w, b), (gamma, beta, mean, var) in zip(params["linears"], params["bns"]):
        x = x @ w + b
        if B != 1:
            x = (x - mean) / jnp.sqrt(var + eps) * gamma + beta
        x = jnp.maximum(x, 0.0)
    w_cls, b_cls = params["classifier"]
    return x @ w_cls + b_cls


if __name__ == "__main__":
    IN_FEATS = 256
    HIDDEN_SIZES = [128, 64]

    key = jax.random.PRNGKey(0)
    key_params, key_x1, key_x2 = jax.random.split(key, 3)
    params = init_params(key_params, IN_FEATS, HIDDEN_SIZES)

    x_small = jax.random.normal(key_x1, (8, IN_FEATS), jnp.float32)    # 1 grid step
    x_multi = jax.random.normal(key_x2, (256, IN_FEATS), jnp.float32)  # 2 grid steps

    def _run(x, single_buffer):
        return jax.block_until_ready(
            mol_pred_dnn_forward(params, x, single_buffer_weights=single_buffer))

    try:
        outs = [_run(x_small, True), _run(x_multi, True)]
    except Exception:
        # pl.Buffered(1) (single-buffered resident weights) unavailable in this
        # JAX version -> fall back to default double buffering.
        outs = [_run(x_small, False), _run(x_multi, False)]

    for x, out in zip((x_small, x_multi), outs):
        ref = reference_forward(params, x)
        assert out.shape == ref.shape == (x.shape[0], 1), (out.shape, ref.shape)
        # bf16 matmul operands (f32 accumulation) -> loosened tolerance vs f32 ref.
        assert jnp.allclose(out, ref, atol=3e-2, rtol=3e-2), "mismatch vs reference"

    print("KERNEL_OK")
</pallas_src>

<mosaic_0001>
module attributes {stable_mosaic.version = 11 : i64} {
  func.func @_fused_mlp_kernel(%arg0: i32, %arg1: memref<128x256xf32, #tpu.memory_space<vmem>>, %arg2: memref<256x128xbf16, #tpu.memory_space<vmem>>, %arg3: memref<1x128xf32, #tpu.memory_space<vmem>>, %arg4: memref<128x128xbf16, #tpu.memory_space<vmem>>, %arg5: memref<1x128xf32, #tpu.memory_space<vmem>>, %arg6: memref<16x128xbf16, #tpu.memory_space<vmem>>, %arg7: memref<1x1xf32, #tpu.memory_space<smem>>, %arg8: memref<1x1x128xf32, #tpu.memory_space<vmem>>) attributes {dimension_semantics = [#tpu.dimension_semantics<parallel>], iteration_bounds = array<i64: 1>, scalar_prefetch = 0 : i64, scratch_operands = 0 : i64, tpu.core_type = #tpu.core_type<tc>, window_params = [{transform_indices = @transform_0, window_bounds = array<i64: 128, 256>}, {pipeline_mode = #tpu.pipeline_mode<synchronous>, transform_indices = @transform_1, window_bounds = array<i64: 256, 128>}, {pipeline_mode = #tpu.pipeline_mode<synchronous>, transform_indices = @transform_2, window_bounds = array<i64: 1, 128>}, {pipeline_mode = #tpu.pipeline_mode<synchronous>, transform_indices = @transform_3, window_bounds = array<i64: 128, 128>}, {pipeline_mode = #tpu.pipeline_mode<synchronous>, transform_indices = @transform_4, window_bounds = array<i64: 1, 128>}, {pipeline_mode = #tpu.pipeline_mode<synchronous>, transform_indices = @transform_5, window_bounds = array<i64: 16, 128>}, {transform_indices = @transform_6, window_bounds = array<i64: 1, 1>}, {transform_indices = @transform_7, window_bounds = array<i64: 1, 1, 128>}]} {
    %c0 = arith.constant 0 : index
    %c0_0 = arith.constant 0 : index
    %0 = vector.load %arg1[%c0, %c0_0] : memref<128x256xf32, #tpu.memory_space<vmem>>, vector<128x256xf32>
    %1 = arith.truncf %0 : vector<128x256xf32> to vector<128x256xbf16>
    %c0_1 = arith.constant 0 : index
    %c0_2 = arith.constant 0 : index
    %2 = vector.load %arg2[%c0_1, %c0_2] : memref<256x128xbf16, #tpu.memory_space<vmem>>, vector<256x128xbf16>
    %c0_3 = arith.constant 0 : index
    %c0_4 = arith.constant 0 : index
    %3 = vector.load %arg3[%c0_3, %c0_4] : memref<1x128xf32, #tpu.memory_space<vmem>>, vector<1x128xf32>
    %cst = arith.constant dense<0.000000e+00> : vector<128x128xf32>
    %4 = tpu.matmul %1, %2, %cst {dimension_numbers = #tpu.dot_dimension_numbers<[1], [0], [0], [1], [0, 0, 1, 1], [], []>} : vector<128x256xbf16>, vector<256x128xbf16>, vector<128x128xf32> -> vector<128x128xf32>
    %5 = vector.broadcast %3 : vector<1x128xf32> to vector<128x128xf32>
    %6 = arith.addf %4, %5 : vector<128x128xf32>
    %cst_5 = arith.constant 0.000000e+00 : f32
    %7 = vector.broadcast %cst_5 : f32 to vector<128x128xf32>
    %8 = arith.maximumf %6, %7 : vector<128x128xf32>
    %9 = arith.truncf %8 : vector<128x128xf32> to vector<128x128xbf16>
    %c0_6 = arith.constant 0 : index
    %c0_7 = arith.constant 0 : index
    %10 = vector.load %arg4[%c0_6, %c0_7] : memref<128x128xbf16, #tpu.memory_space<vmem>>, vector<128x128xbf16>
    %c0_8 = arith.constant 0 : index
    %c0_9 = arith.constant 0 : index
    %11 = vector.load %arg5[%c0_8, %c0_9] : memref<1x128xf32, #tpu.memory_space<vmem>>, vector<1x128xf32>
    %cst_10 = arith.constant dense<0.000000e+00> : vector<128x128xf32>
    %12 = tpu.matmul %9, %10, %cst_10 {dimension_numbers = #tpu.dot_dimension_numbers<[1], [0], [0], [1], [0, 0, 1, 1], [], []>} : vector<128x128xbf16>, vector<128x128xbf16>, vector<128x128xf32> -> vector<128x128xf32>
    %13 = vector.broadcast %11 : vector<1x128xf32> to vector<128x128xf32>
    %14 = arith.addf %12, %13 : vector<128x128xf32>
    %cst_11 = arith.constant 0.000000e+00 : f32
    %15 = vector.broadcast %cst_11 : f32 to vector<128x128xf32>
    %16 = arith.maximumf %14, %15 : vector<128x128xf32>
    %17 = arith.truncf %16 : vector<128x128xf32> to vector<128x128xbf16>
    %c0_12 = arith.constant 0 : index
    %c0_13 = arith.constant 0 : index
    %18 = vector.load %arg6[%c0_12, %c0_13] : memref<16x128xbf16, #tpu.memory_space<vmem>>, vector<16x128xbf16>
    %cst_14 = arith.constant dense<0.000000e+00> : vector<16x128xf32>
    %19 = tpu.matmul %18, %17, %cst_14 {dimension_numbers = #tpu.dot_dimension_numbers<[1], [1], [0], [0], [0, 0, 1, 0], [], []>} : vector<16x128xbf16>, vector<128x128xbf16>, vector<16x128xf32> -> vector<16x128xf32>
    %20 = vector.extract_strided_slice %19 {offsets = [0, 0], sizes = [1, 128], strides = [1, 1]} : vector<16x128xf32> to vector<1x128xf32>
    %c0_15 = arith.constant 0 : index
    %c0_16 = arith.constant 0 : index
    %21 = memref.load %arg7[%c0_15, %c0_16] : memref<1x1xf32, #tpu.memory_space<smem>>
    %22 = vector.broadcast %21 : f32 to vector<1x128xf32>
    %23 = arith.addf %20, %22 : vector<1x128xf32>
    %24 = vector.shape_cast %23 : vector<1x128xf32> to vector<1x1x128xf32>
    %c0_17 = arith.constant 0 : index
    %c0_18 = arith.constant 0 : index
    %c0_19 = arith.constant 0 : index
    %25 = vector.load %arg8[%c0_17, %c0_18, %c0_19] : memref<1x1x128xf32, #tpu.memory_space<vmem>>, vector<1x1x128xf32>
    tpu.vector_store %arg8[%c0_17, %c0_18, %c0_19], %24 {strides = array<i32>} : memref<1x1x128xf32, #tpu.memory_space<vmem>>, vector<1x1x128xf32>,
    return
  }
  func.func @transform_0(%arg0: i32) -> (i32, i32) {
    %c0_i32 = arith.constant 0 : i32
    %c0_i32_0 = arith.constant 0 : i32
    return %arg0, %c0_i32 : i32, i32
  }
  func.func @transform_1(%arg0: i32) -> (i32, i32) {
    %c0_i32 = arith.constant 0 : i32
    %c0_i32_0 = arith.constant 0 : i32
    %c0_i32_1 = arith.constant 0 : i32
    return %c0_i32, %c0_i32_0 : i32, i32
  }
  func.func @transform_2(%arg0: i32) -> (i32, i32) {
    %c0_i32 = arith.constant 0 : i32
    %c0_i32_0 = arith.constant 0 : i32
    %c0_i32_1 = arith.constant 0 : i32
    return %c0_i32, %c0_i32_0 : i32, i32
  }
  func.func @transform_3(%arg0: i32) -> (i32, i32) {
    %c0_i32 = arith.constant 0 : i32
    %c0_i32_0 = arith.constant 0 : i32
    %c0_i32_1 = arith.constant 0 : i32
    return %c0_i32, %c0_i32_0 : i32, i32
  }
  func.func @transform_4(%arg0: i32) -> (i32, i32) {
    %c0_i32 = arith.constant 0 : i32
    %c0_i32_0 = arith.constant 0 : i32
    %c0_i32_1 = arith.constant 0 : i32
    return %c0_i32, %c0_i32_0 : i32, i32
  }
  func.func @transform_5(%arg0: i32) -> (i32, i32) {
    %c0_i32 = arith.constant 0 : i32
    %c0_i32_0 = arith.constant 0 : i32
    %c0_i32_1 = arith.constant 0 : i32
    return %c0_i32, %c0_i32_0 : i32, i32
  }
  func.func @transform_6(%arg0: i32) -> (i32, i32) {
    %c0_i32 = arith.constant 0 : i32
    %c0_i32_0 = arith.constant 0 : i32
    %c0_i32_1 = arith.constant 0 : i32
    return %c0_i32, %c0_i32_0 : i32, i32
  }
  func.func @transform_7(%arg0: i32) -> (i32, i32, i32) {
    %c0_i32 = arith.constant 0 : i32
    %c0_i32_0 = arith.constant 0 : i32
    %c0_i32_1 = arith.constant 0 : i32
    return %arg0, %c0_i32, %c0_i32_0 : i32, i32, i32
  }
}

module attributes {stable_mosaic.version = 11 : i64} {
  func.func @_fused_mlp_kernel(%arg0: i32, %arg1: memref<128x256xf32, #tpu.memory_space<vmem>>, %arg2: memref<256x128xbf16, #tpu.memory_space<vmem>>, %arg3: memref<1x128xf32, #tpu.memory_space<vmem>>, %arg4: memref<128x128xbf16, #tpu.memory_space<vmem>>, %arg5: memref<1x128xf32, #tpu.memory_space<vmem>>, %arg6: memref<16x128xbf16, #tpu.memory_space<vmem>>, %arg7: memref<1x1xf32, #tpu.memory_space<smem>>, %arg8: memref<1x1x128xf32, #tpu.memory_space<vmem>>) attributes {dimension_semantics = [#tpu.dimension_semantics<parallel>], iteration_bounds = array<i64: 1>, scalar_prefetch = 0 : i64, scratch_operands = 0 : i64, tpu.core_type = #tpu.core_type<tc>, window_params = [{transform_indices = @transform_0, window_bounds = array<i64: 128, 256>}, {pipeline_mode = #tpu.pipeline_mode<synchronous>, transform_indices = @transform_1, window_bounds = array<i64: 256, 128>}, {pipeline_mode = #tpu.pipeline_mode<synchronous>, transform_indices = @transform_2, window_bounds = array<i64: 1, 128>}, {pipeline_mode = #tpu.pipeline_mode<synchronous>, transform_indices = @transform_3, window_bounds = array<i64: 128, 128>}, {pipeline_mode = #tpu.pipeline_mode<synchronous>, transform_indices = @transform_4, window_bounds = array<i64: 1, 128>}, {pipeline_mode = #tpu.pipeline_mode<synchronous>, transform_indices = @transform_5, window_bounds = array<i64: 16, 128>}, {transform_indices = @transform_6, window_bounds = array<i64: 1, 1>}, {transform_indices = @transform_7, window_bounds = array<i64: 1, 1, 128>}]} {
    %c0 = arith.constant 0 : index
    %c0_0 = arith.constant 0 : index
    %0 = vector.load %arg1[%c0, %c0_0] : memref<128x256xf32, #tpu.memory_space<vmem>>, vector<128x256xf32>
    %1 = arith.truncf %0 : vector<128x256xf32> to vector<128x256xbf16>
    %c0_1 = arith.constant 0 : index
    %c0_2 = arith.constant 0 : index
    %2 = vector.load %arg2[%c0_1, %c0_2] : memref<256x128xbf16, #tpu.memory_space<vmem>>, vector<256x128xbf16>
    %c0_3 = arith.constant 0 : index
    %c0_4 = arith.constant 0 : index
    %3 = vector.load %arg3[%c0_3, %c0_4] : memref<1x128xf32, #tpu.memory_space<vmem>>, vector<1x128xf32>
    %cst = arith.constant dense<0.000000e+00> : vector<128x128xf32>
    %4 = tpu.matmul %1, %2, %cst {dimension_numbers = #tpu.dot_dimension_numbers<[1], [0], [0], [1], [0, 0, 1, 1], [], []>} : vector<128x256xbf16>, vector<256x128xbf16>, vector<128x128xf32> -> vector<128x128xf32>
    %5 = vector.broadcast %3 : vector<1x128xf32> to vector<128x128xf32>
    %6 = arith.addf %4, %5 : vector<128x128xf32>
    %cst_5 = arith.constant 0.000000e+00 : f32
    %7 = vector.broadcast %cst_5 : f32 to vector<128x128xf32>
    %8 = arith.maximumf %6, %7 : vector<128x128xf32>
    %9 = arith.truncf %8 : vector<128x128xf32> to vector<128x128xbf16>
    %c0_6 = arith.constant 0 : index
    %c0_7 = arith.constant 0 : index
    %10 = vector.load %arg4[%c0_6, %c0_7] : memref<128x128xbf16, #tpu.memory_space<vmem>>, vector<128x128xbf16>
    %c0_8 = arith.constant 0 : index
    %c0_9 = arith.constant 0 : index
    %11 = vector.load %arg5[%c0_8, %c0_9] : memref<1x128xf32, #tpu.memory_space<vmem>>, vector<1x128xf32>
    %cst_10 = arith.constant dense<0.000000e+00> : vector<128x128xf32>
    %12 = tpu.matmul %9, %10, %cst_10 {dimension_numbers = #tpu.dot_dimension_numbers<[1], [0], [0], [1], [0, 0, 1, 1], [], []>} : vector<128x128xbf16>, vector<128x128xbf16>, vector<128x128xf32> -> vector<128x128xf32>
    %13 = vector.broadcast %11 : vector<1x128xf32> to vector<128x128xf32>
    %14 = arith.addf %12, %13 : vector<128x128xf32>
    %cst_11 = arith.constant 0.000000e+00 : f32
    %15 = vector.broadcast %cst_11 : f32 to vector<128x128xf32>
    %16 = arith.maximumf %14, %15 : vector<128x128xf32>
    %17 = arith.truncf %16 : vector<128x128xf32> to vector<128x128xbf16>
    %c0_12 = arith.constant 0 : index
    %c0_13 = arith.constant 0 : index
    %18 = vector.load %arg6[%c0_12, %c0_13] : memref<16x128xbf16, #tpu.memory_space<vmem>>, vector<16x128xbf16>
    %cst_14 = arith.constant dense<0.000000e+00> : vector<16x128xf32>
    %19 = tpu.matmul %18, %17, %cst_14 {dimension_numbers = #tpu.dot_dimension_numbers<[1], [1], [0], [0], [0, 0, 1, 0], [], []>} : vector<16x128xbf16>, vector<128x128xbf16>, vector<16x128xf32> -> vector<16x128xf32>
    %20 = vector.extract_strided_slice %19 {offsets = [0, 0], sizes = [1, 128], strides = [1, 1]} : vector<16x128xf32> to vector<1x128xf32>
    %c0_15 = arith.constant 0 : index
    %c0_16 = arith.constant 0 : index
    %21 = memref.load %arg7[%c0_15, %c0_16] : memref<1x1xf32, #tpu.memory_space<smem>>
    %22 = vector.broadcast %21 : f32 to vector<1x128xf32>
    %23 = arith.addf %20, %22 : vector<1x128xf32>
    %24 = vector.shape_cast %23 : vector<1x128xf32> to vector<1x1x128xf32>
    %c0_17 = arith.constant 0 : index
    %c0_18 = arith.constant 0 : index
    %c0_19 = arith.constant 0 : index
    %25 = vector.load %arg8[%c0_17, %c0_18, %c0_19] : memref<1x1x128xf32, #tpu.memory_space<vmem>>, vector<1x1x128xf32>
    tpu.vector_store %arg8[%c0_17, %c0_18, %c0_19], %24 {strides = array<i32>} : memref<1x1x128xf32, #tpu.memory_space<vmem>>, vector<1x1x128xf32>,
    return
  }
  func.func @transform_0(%arg0: i32) -> (i32, i32) {
    %c0_i32 = arith.constant 0 : i32
    %c0_i32_0 = arith.constant 0 : i32
    return %arg0, %c0_i32 : i32, i32
  }
  func.func @transform_1(%arg0: i32) -> (i32, i32) {
    %c0_i32 = arith.constant 0 : i32
    %c0_i32_0 = arith.constant 0 : i32
    %c0_i32_1 = arith.constant 0 : i32
    return %c0_i32, %c0_i32_0 : i32, i32
  }
  func.func @transform_2(%arg0: i32) -> (i32, i32) {
    %c0_i32 = arith.constant 0 : i32
    %c0_i32_0 = arith.constant 0 : i32
    %c0_i32_1 = arith.constant 0 : i32
    return %c0_i32, %c0_i32_0 : i32, i32
  }
  func.func @transform_3(%arg0: i32) -> (i32, i32) {
    %c0_i32 = arith.constant 0 : i32
    %c0_i32_0 = arith.constant 0 : i32
    %c0_i32_1 = arith.constant 0 : i32
    return %c0_i32, %c0_i32_0 : i32, i32
  }
  func.func @transform_4(%arg0: i32) -> (i32, i32) {
    %c0_i32 = arith.constant 0 : i32
    %c0_i32_0 = arith.constant 0 : i32
    %c0_i32_1 = arith.constant 0 : i32
    return %c0_i32, %c0_i32_0 : i32, i32
  }
  func.func @transform_5(%arg0: i32) -> (i32, i32) {
    %c0_i32 = arith.constant 0 : i32
    %c0_i32_0 = arith.constant 0 : i32
    %c0_i32_1 = arith.constant 0 : i32
    return %c0_i32, %c0_i32_0 : i32, i32
  }
  func.func @transform_6(%arg0: i32) -> (i32, i32) {
    %c0_i32 = arith.constant 0 : i32
    %c0_i32_0 = arith.constant 0 : i32
    %c0_i32_1 = arith.constant 0 : i32
    return %c0_i32, %c0_i32_0 : i32, i32
  }
  func.func @transform_7(%arg0: i32) -> (i32, i32, i32) {
    %c0_i32 = arith.constant 0 : i32
    %c0_i32_0 = arith.constant 0 : i32
    %c0_i32_1 = arith.constant 0 : i32
    return %arg0, %c0_i32, %c0_i32_0 : i32, i32, i32
  }
}

</mosaic_0001>

<llo_original>
// kernel: mol_pred_dnn_forward.1
$region0: #{mol_pred_dnn_forward.1}
  #allocation0 [shape = 'u32[]', space=smem, size = 0x4, offset = 0x4, fixed_abs, tag = 'smem constant byte address 0x4 - core index']
  #allocation1 [shape = 'u32[72,128]{1,0:T(1,128)}', space=vmem, size = 0x9000, scoped, tag = 'internal scratch']
  #allocation2 [shape = 'f32[1,1]{1,0:T(1,128)S(6)}', space=smem, size = 0x200, scoped, tag = 'scoped memory for mol_pred_dnn_forward.1']
  %s0 = inlined_call_operand.vmem [shape: f32[128,256], index: 0, kind: input, shape index: {}]
  %s1 = inlined_call_operand.vmem [shape: bf16[256,128], index: 1, kind: input, shape index: {}]
  %s2 = inlined_call_operand.vmem [shape: f32[1,128], index: 2, kind: input, shape index: {}]
  %s3 = inlined_call_operand.vmem [shape: bf16[128,128], index: 3, kind: input, shape index: {}]
  %s4 = inlined_call_operand.vmem [shape: f32[1,128], index: 4, kind: input, shape index: {}]
  %s5 = inlined_call_operand.vmem [shape: bf16[16,128], index: 5, kind: input, shape index: {}]
  %s6 = inlined_call_operand.<no memory space> [shape: f32[1,1], index: 6, kind: input, shape index: {}]
  %s7 = inlined_call_operand.vmem [shape: f32[1,1,128], index: 7, kind: output, shape index: {}]
  %s8 = sld [smem:[#allocation0]]
  $region38: #{mol_pred_dnn_forward.1} parent=0
    _
  %s10 = ssub.s32 1, %s8
  %s11 = scalar_select 0, %s10, %s8
  %12 = sst [smem:[#allocation2]] %s6
  // Predicated region
  $region2: #{mol_pred_dnn_forward.1} parent=0 // pred_check
    _
  $region3: #{mol_pred_dnn_forward.1} parent=0 // pred_check_branch
    %14 = sbr.rel (0) target = $region5
  $region4: #{mol_pred_dnn_forward.1} parent=0 // pred_region
    _
  $region5: #{mol_pred_dnn_forward.1} parent=0 // pred_fallthru
    _
  // Predicated region
  $region6: #{mol_pred_dnn_forward.1} parent=0 // pred_check
    _
  $region7: #{mol_pred_dnn_forward.1} parent=0 // pred_check_branch
    %16 = sbr.rel (0) target = $region9
  $region8: #{mol_pred_dnn_forward.1} parent=0 // pred_region
    _
  $region9: #{mol_pred_dnn_forward.1} parent=0 // pred_fallthru
    _
  // Predicated region
  $region10: #{mol_pred_dnn_forward.1} parent=0 // pred_check
    _
  $region11: #{mol_pred_dnn_forward.1} parent=0 // pred_check_branch
    %18 = sbr.rel (0) target = $region13
  $region12: #{mol_pred_dnn_forward.1} parent=0 // pred_region
    _
  $region13: #{mol_pred_dnn_forward.1} parent=0 // pred_fallthru
    _
  // Predicated region
  $region14: #{mol_pred_dnn_forward.1} parent=0 // pred_check
    _
  $region15: #{mol_pred_dnn_forward.1} parent=0 // pred_check_branch
    %20 = sbr.rel (0) target = $region17
  $region16: #{mol_pred_dnn_forward.1} parent=0 // pred_region
    _
  $region17: #{mol_pred_dnn_forward.1} parent=0 // pred_fallthru
    _
  // Predicated region
  $region18: #{mol_pred_dnn_forward.1} parent=0 // pred_check
    _
  $region19: #{mol_pred_dnn_forward.1} parent=0 // pred_check_branch
    %22 = sbr.rel (0) target = $region21
  $region20: #{mol_pred_dnn_forward.1} parent=0 // pred_region
    _
  $region21: #{mol_pred_dnn_forward.1} parent=0 // pred_fallthru
    _
  // Predicated region
  $region22: #{mol_pred_dnn_forward.1} parent=0 // pred_check
    _
  $region23: #{mol_pred_dnn_forward.1} parent=0 // pred_check_branch
    %24 = sbr.rel (0) target = $region25
  $region24: #{mol_pred_dnn_forward.1} parent=0 // pred_region
    _
  $region25: #{mol_pred_dnn_forward.1} parent=0 // pred_fallthru
    _
  // Predicated region
  $region26: #{mol_pred_dnn_forward.1} parent=0 // pred_check
    _
  $region27: #{mol_pred_dnn_forward.1} parent=0 // pred_check_branch
    %26 = sbr.rel (0) target = $region29
  $region28: #{mol_pred_dnn_forward.1} parent=0 // pred_region
    _
  $region29: #{mol_pred_dnn_forward.1} parent=0 // pred_fallthru
    _
  %v27 = vld [vmem:[%s0] sm:$0xff]
  %v28 = vld [vmem:[%s0 + $0x8] sm:$0xff]
  %v29 = vld [vmem:[%s0 + $0x10] sm:$0xff]
  %v30 = vld [vmem:[%s0 + $0x18] sm:$0xff]
  %v31 = vld [vmem:[%s0 + $0x20] sm:$0xff]
  %v32 = vld [vmem:[%s0 + $0x28] sm:$0xff]
  %v33 = vld [vmem:[%s0 + $0x30] sm:$0xff]
  %v34 = vld [vmem:[%s0 + $0x38] sm:$0xff]
  %v35 = vld [vmem:[%s0 + $0x40] sm:$0xff]
  %v36 = vld [vmem:[%s0 + $0x48] sm:$0xff]
  %v37 = vld [vmem:[%s0 + $0x50] sm:$0xff]
  %v38 = vld [vmem:[%s0 + $0x58] sm:$0xff]
  %v39 = vld [vmem:[%s0 + $0x60] sm:$0xff]
  %v40 = vld [vmem:[%s0 + $0x68] sm:$0xff]
  %v41 = vld [vmem:[%s0 + $0x70] sm:$0xff]
  %v42 = vld [vmem:[%s0 + $0x78] sm:$0xff]
  %v43 = vld [vmem:[%s0 + $0x80] sm:$0xff]
  %v44 = vld [vmem:[%s0 + $0x88] sm:$0xff]
  %v45 = vld [vmem:[%s0 + $0x90] sm:$0xff]
  %v46 = vld [vmem:[%s0 + $0x98] sm:$0xff]
  %v47 = vld [vmem:[%s0 + $0xa0] sm:$0xff]
  %v48 = vld [vmem:[%s0 + $0xa8] sm:$0xff]
  %v49 = vld [vmem:[%s0 + $0xb0] sm:$0xff]
  %v50 = vld [vmem:[%s0 + $0xb8] sm:$0xff]
  %v51 = vld [vmem:[%s0 + $0xc0] sm:$0xff]
  %v52 = vld [vmem:[%s0 + $0xc8] sm:$0xff]
  %v53 = vld [vmem:[%s0 + $0xd0] sm:$0xff]
  %v54 = vld [vmem:[%s0 + $0xd8] sm:$0xff]
  %v55 = vld [vmem:[%s0 + $0xe0] sm:$0xff]
  %v56 = vld [vmem:[%s0 + $0xe8] sm:$0xff]
  %v57 = vld [vmem:[%s0 + $0xf0] sm:$0xff]
  %v58 = vld [vmem:[%s0 + $0xf8] sm:$0xff]
  %v59 = vpack.c.bf16 %v29, %v27
  %v60 = vpack.c.bf16 %v30, %v28
  %v61 = vpack.c.bf16 %v33, %v31
  %v62 = vpack.c.bf16 %v34, %v32
  %v63 = vpack.c.bf16 %v37, %v35
  %v64 = vpack.c.bf16 %v38, %v36
  %v65 = vpack.c.bf16 %v41, %v39
  %v66 = vpack.c.bf16 %v42, %v40
  %v67 = vpack.c.bf16 %v45, %v43
  %v68 = vpack.c.bf16 %v46, %v44
  %v69 = vpack.c.bf16 %v49, %v47
  %v70 = vpack.c.bf16 %v50, %v48
  %v71 = vpack.c.bf16 %v53, %v51
  %v72 = vpack.c.bf16 %v54, %v52
  %v73 = vpack.c.bf16 %v57, %v55
  %v74 = vpack.c.bf16 %v58, %v56
  %v75 = vld [vmem:[%s1] sm:$0xf]
  %v76 = vld [vmem:[%s1 + $0x4] sm:$0xf]
  %v77 = vld [vmem:[%s1 + $0x8] sm:$0xf]
  %v78 = vld [vmem:[%s1 + $0xc] sm:$0xf]
  %v79 = vld [vmem:[%s1 + $0x10] sm:$0xf]
  %v80 = vld [vmem:[%s1 + $0x14] sm:$0xf]
  %v81 = vld [vmem:[%s1 + $0x18] sm:$0xf]
  %v82 = vld [vmem:[%s1 + $0x1c] sm:$0xf]
  %v83 = vld [vmem:[%s1 + $0x20] sm:$0xf]
  %v84 = vld [vmem:[%s1 + $0x24] sm:$0xf]
  %v85 = vld [vmem:[%s1 + $0x28] sm:$0xf]
  %v86 = vld [vmem:[%s1 + $0x2c] sm:$0xf]
  %v87 = vld [vmem:[%s1 + $0x30] sm:$0xf]
  %v88 = vld [vmem:[%s1 + $0x34] sm:$0xf]
  %v89 = vld [vmem:[%s1 + $0x38] sm:$0xf]
  %v90 = vld [vmem:[%s1 + $0x3c] sm:$0xf]
  %v91 = vld [vmem:[%s1 + $0x40] sm:$0xf]
  %v92 = vld [vmem:[%s1 + $0x44] sm:$0xf]
  %v93 = vld [vmem:[%s1 + $0x48] sm:$0xf]
  %v94 = vld [vmem:[%s1 + $0x4c] sm:$0xf]
  %v95 = vld [vmem:[%s1 + $0x50] sm:$0xf]
  %v96 = vld [vmem:[%s1 + $0x54] sm:$0xf]
  %v97 = vld [vmem:[%s1 + $0x58] sm:$0xf]
  %v98 = vld [vmem:[%s1 + $0x5c] sm:$0xf]
  %v99 = vld [vmem:[%s1 + $0x60] sm:$0xf]
  %v100 = vld [vmem:[%s1 + $0x64] sm:$0xf]
  %v101 = vld [vmem:[%s1 + $0x68] sm:$0xf]
  %v102 = vld [vmem:[%s1 + $0x6c] sm:$0xf]
  %v103 = vld [vmem:[%s1 + $0x70] sm:$0xf]
  %v104 = vld [vmem:[%s1 + $0x74] sm:$0xf]
  %v105 = vld [vmem:[%s1 + $0x78] sm:$0xf]
  %v106 = vld [vmem:[%s1 + $0x7c] sm:$0xf]
  %v107 = vld [vmem:[%s2] sm:$0x1]
  %v109 = vperm.slane %v107, 0
  %v143 = vunpack.c.l.b16 %v75
  %v144 = vunpack.c.l.b16 %v76
  %v145 = vunpack.c.l.b16 %v77
  %v146 = vunpack.c.l.b16 %v78
  %v147 = vunpack.c.l.b16 %v79
  %v148 = vunpack.c.l.b16 %v80
  %v149 = vunpack.c.l.b16 %v81
  %v150 = vunpack.c.l.b16 %v82
  %v151 = vunpack.c.l.b16 %v83
  %v152 = vunpack.c.l.b16 %v84
  %v153 = vunpack.c.l.b16 %v85
  %v154 = vunpack.c.l.b16 %v86
  %v155 = vunpack.c.l.b16 %v87
  %v156 = vunpack.c.l.b16 %v88
  %v157 = vunpack.c.l.b16 %v89
  %v158 = vunpack.c.l.b16 %v90
  %v159 = vunpack.c.l.b16 %v91
  %v160 = vunpack.c.l.b16 %v92
  %v161 = vunpack.c.l.b16 %v93
  %v162 = vunpack.c.l.b16 %v94
  %v163 = vunpack.c.l.b16 %v95
  %v164 = vunpack.c.l.b16 %v96
  %v165 = vunpack.c.l.b16 %v97
  %v166 = vunpack.c.l.b16 %v98
  %v167 = vunpack.c.l.b16 %v99
  %v168 = vunpack.c.l.b16 %v100
  %v169 = vunpack.c.l.b16 %v101
  %v170 = vunpack.c.l.b16 %v102
  %v171 = vunpack.c.l.b16 %v103
  %v172 = vunpack.c.l.b16 %v104
  %v173 = vunpack.c.l.b16 %v105
  %v174 = vunpack.c.l.b16 %v106
  %v175 = vpack.c.b16 %v144, %v143
  %v176 = vpack.c.b16 %v146, %v145
  %v177 = vpack.c.b16 %v148, %v147
  %v178 = vpack.c.b16 %v150, %v149
  %v179 = vpack.c.b16 %v152, %v151
  %v180 = vpack.c.b16 %v154, %v153
  %v181 = vpack.c.b16 %v156, %v155
  %v182 = vpack.c.b16 %v158, %v157
  %v183 = vpack.c.b16 %v160, %v159
  %v184 = vpack.c.b16 %v162, %v161
  %v185 = vpack.c.b16 %v164, %v163
  %v186 = vpack.c.b16 %v166, %v165
  %v187 = vpack.c.b16 %v168, %v167
  %v188 = vpack.c.b16 %v170, %v169
  %v189 = vpack.c.b16 %v172, %v171
  %v190 = vpack.c.b16 %v174, %v173
  %207 = vmatpush.bf16.msra.mxu0 %v182
  %208 = vmatpush.bf16.msra.mxu0 %v181
  %209 = vmatpush.bf16.msra.mxu0 %v180
  %210 = vmatpush.bf16.msra.mxu0 %v179
  %211 = vmatpush.bf16.msra.mxu0 %v178
  %212 = vmatpush.bf16.msra.mxu0 %v177
  %213 = vmatpush.bf16.msra.mxu0 %v176
  %214 = vmatpush.bf16.msra.mxu0 %v175
  %215 = vmatmul.bf16.gmra.mxu0 %v59
  %v216 = vpop.f32.mrf.mxu0
  %v217 = vadd.f32 %v109, %v216
  %v218 = vpop.f32.mrf.mxu0
  %v219 = vadd.f32 %v109, %v218
  %220 = vmatmul.bf16.gmra.mxu0 %v61
  %v221 = vpop.f32.mrf.mxu0
  %v222 = vadd.f32 %v109, %v221
  %v223 = vpop.f32.mrf.mxu0
  %v224 = vadd.f32 %v109, %v223
  %225 = vmatmul.bf16.gmra.mxu0 %v63
  %v226 = vpop.f32.mrf.mxu0
  %v227 = vadd.f32 %v109, %v226
  %v228 = vpop.f32.mrf.mxu0
  %v229 = vadd.f32 %v109, %v228
  %230 = vmatmul.bf16.gmra.mxu0 %v65
  %v231 = vpop.f32.mrf.mxu0
  %v232 = vadd.f32 %v109, %v231
  %v233 = vpop.f32.mrf.mxu0
  %v234 = vadd.f32 %v109, %v233
  %235 = vmatmul.bf16.gmra.mxu0 %v67
  %v236 = vpop.f32.mrf.mxu0
  %v237 = vadd.f32 %v109, %v236
  %v238 = vpop.f32.mrf.mxu0
  %v239 = vadd.f32 %v109, %v238
  %240 = vmatmul.bf16.gmra.mxu0 %v69
  %v241 = vpop.f32.mrf.mxu0
  %v242 = vadd.f32 %v109, %v241
  %v243 = vpop.f32.mrf.mxu0
  %v244 = vadd.f32 %v109, %v243
  %245 = vmatmul.bf16.gmra.mxu0 %v71
  %v246 = vpop.f32.mrf.mxu0
  %v247 = vadd.f32 %v109, %v246
  %v248 = vpop.f32.mrf.mxu0
  %v249 = vadd.f32 %v109, %v248
  %250 = vmatmul.bf16.gmra.mxu0 %v73
  %v251 = vpop.f32.mrf.mxu0
  %v252 = vadd.f32 %v109, %v251
  %v253 = vpop.f32.mrf.mxu0
  %v254 = vadd.f32 %v109, %v253
  %255 = vdwg.mxu0
  %256 = vmatpush.bf16.msra.mxu0 %v190
  %257 = vmatpush.bf16.msra.mxu0 %v189
  %258 = vmatpush.bf16.msra.mxu0 %v188
  %259 = vmatpush.bf16.msra.mxu0 %v187
  %260 = vmatpush.bf16.msra.mxu0 %v186
  %261 = vmatpush.bf16.msra.mxu0 %v185
  %262 = vmatpush.bf16.msra.mxu0 %v184
  %263 = vmatpush.bf16.msra.mxu0 %v183
  %264 = vmatmul.bf16.gmra.mxu0 %v60
  %v265 = vpop.f32.mrf.mxu0
  %v266 = vadd.f32 %v217, %v265
  %v267 = vpop.f32.mrf.mxu0
  %v268 = vadd.f32 %v219, %v267
  %269 = vmatmul.bf16.gmra.mxu0 %v62
  %v270 = vpop.f32.mrf.mxu0
  %v271 = vadd.f32 %v222, %v270
  %v272 = vpop.f32.mrf.mxu0
  %v273 = vadd.f32 %v224, %v272
  %274 = vmatmul.bf16.gmra.mxu0 %v64
  %v275 = vpop.f32.mrf.mxu0
  %v276 = vadd.f32 %v227, %v275
  %v277 = vpop.f32.mrf.mxu0
  %v278 = vadd.f32 %v229, %v277
  %279 = vmatmul.bf16.gmra.mxu0 %v66
  %v280 = vpop.f32.mrf.mxu0
  %v281 = vadd.f32 %v232, %v280
  %v282 = vpop.f32.mrf.mxu0
  %v283 = vadd.f32 %v234, %v282
  %284 = vmatmul.bf16.gmra.mxu0 %v68
  %v285 = vpop.f32.mrf.mxu0
  %v286 = vadd.f32 %v237, %v285
  %v287 = vpop.f32.mrf.mxu0
  %v288 = vadd.f32 %v239, %v287
  %289 = vmatmul.bf16.gmra.mxu0 %v70
  %v290 = vpop.f32.mrf.mxu0
  %v291 = vadd.f32 %v242, %v290
  %v292 = vpop.f32.mrf.mxu0
  %v293 = vadd.f32 %v244, %v292
  %294 = vmatmul.bf16.gmra.mxu0 %v72
  %v295 = vpop.f32.mrf.mxu0
  %v296 = vadd.f32 %v247, %v295
  %v297 = vpop.f32.mrf.mxu0
  %v298 = vadd.f32 %v249, %v297
  %299 = vmatmul.bf16.gmra.mxu0 %v74
  %v300 = vpop.f32.mrf.mxu0
  %v301 = vadd.f32 %v252, %v300
  %v302 = vpop.f32.mrf.mxu0
  %v303 = vadd.f32 %v254, %v302
  %304 = vdwg.mxu0
  %v305 = vmax.f32 %v266, 0.0
  %v306 = vmax.f32 %v268, 0.0
  %v307 = vmax.f32 %v271, 0.0
  %v308 = vmax.f32 %v273, 0.0
  %v309 = vmax.f32 %v276, 0.0
  %v310 = vmax.f32 %v278, 0.0
  %v311 = vmax.f32 %v281, 0.0
  %v312 = vmax.f32 %v283, 0.0
  %v313 = vmax.f32 %v286, 0.0
  %v314 = vmax.f32 %v288, 0.0
  %v315 = vmax.f32 %v291, 0.0
  %v316 = vmax.f32 %v293, 0.0
  %v317 = vmax.f32 %v296, 0.0
  %v318 = vmax.f32 %v298, 0.0
  %v319 = vmax.f32 %v301, 0.0
  %v320 = vmax.f32 %v303, 0.0
  %v321 = vpack.c.bf16 %v306, %v305
  %v322 = vpack.c.bf16 %v308, %v307
  %v323 = vpack.c.bf16 %v310, %v309
  %v324 = vpack.c.bf16 %v312, %v311
  %v325 = vpack.c.bf16 %v314, %v313
  %v326 = vpack.c.bf16 %v316, %v315
  %v327 = vpack.c.bf16 %v318, %v317
  %v328 = vpack.c.bf16 %v320, %v319
  %v329 = vld [vmem:[%s3] sm:$0xf]
  %v330 = vld [vmem:[%s3 + $0x4] sm:$0xf]
  %v331 = vld [vmem:[%s3 + $0x8] sm:$0xf]
  %v332 = vld [vmem:[%s3 + $0xc] sm:$0xf]
  %v333 = vld [vmem:[%s3 + $0x10] sm:$0xf]
  %v334 = vld [vmem:[%s3 + $0x14] sm:$0xf]
  %v335 = vld [vmem:[%s3 + $0x18] sm:$0xf]
  %v336 = vld [vmem:[%s3 + $0x1c] sm:$0xf]
  %v337 = vld [vmem:[%s3 + $0x20] sm:$0xf]
  %v338 = vld [vmem:[%s3 + $0x24] sm:$0xf]
  %v339 = vld [vmem:[%s3 + $0x28] sm:$0xf]
  %v340 = vld [vmem:[%s3 + $0x2c] sm:$0xf]
  %v341 = vld [vmem:[%s3 + $0x30] sm:$0xf]
  %v342 = vld [vmem:[%s3 + $0x34] sm:$0xf]
  %v343 = vld [vmem:[%s3 + $0x38] sm:$0xf]
  %v344 = vld [vmem:[%s3 + $0x3c] sm:$0xf]
  %v345 = vld [vmem:[%s4] sm:$0x1]
  %v347 = vperm.slane %v345, 0
  %v365 = vunpack.c.l.b16 %v329
  %v366 = vunpack.c.l.b16 %v330
  %v367 = vunpack.c.l.b16 %v331
  %v368 = vunpack.c.l.b16 %v332
  %v369 = vunpack.c.l.b16 %v333
  %v370 = vunpack.c.l.b16 %v334
  %v371 = vunpack.c.l.b16 %v335
  %v372 = vunpack.c.l.b16 %v336
  %v373 = vunpack.c.l.b16 %v337
  %v374 = vunpack.c.l.b16 %v338
  %v375 = vunpack.c.l.b16 %v339
  %v376 = vunpack.c.l.b16 %v340
  %v377 = vunpack.c.l.b16 %v341
  %v378 = vunpack.c.l.b16 %v342
  %v379 = vunpack.c.l.b16 %v343
  %v380 = vunpack.c.l.b16 %v344
  %v381 = vpack.c.b16 %v366, %v365
  %v382 = vpack.c.b16 %v368, %v367
  %v383 = vpack.c.b16 %v370, %v369
  %v384 = vpack.c.b16 %v372, %v371
  %v385 = vpack.c.b16 %v374, %v373
  %v386 = vpack.c.b16 %v376, %v375
  %v387 = vpack.c.b16 %v378, %v377
  %v388 = vpack.c.b16 %v380, %v379
  %397 = vmatpush.bf16.msra.mxu0 %v388
  %398 = vmatpush.bf16.msra.mxu0 %v387
  %399 = vmatpush.bf16.msra.mxu0 %v386
  %400 = vmatpush.bf16.msra.mxu0 %v385
  %401 = vmatpush.bf16.msra.mxu0 %v384
  %402 = vmatpush.bf16.msra.mxu0 %v383
  %403 = vmatpush.bf16.msra.mxu0 %v382
  %404 = vmatpush.bf16.msra.mxu0 %v381
  %405 = vmatmul.bf16.gmra.mxu0 %v321
  %v406 = vpop.f32.mrf.mxu0
  %v407 = vadd.f32 %v347, %v406
  %v408 = vpop.f32.mrf.mxu0
  %v409 = vadd.f32 %v347, %v408
  %410 = vmatmul.bf16.gmra.mxu0 %v322
  %v411 = vpop.f32.mrf.mxu0
  %v412 = vadd.f32 %v347, %v411
  %v413 = vpop.f32.mrf.mxu0
  %v414 = vadd.f32 %v347, %v413
  %415 = vmatmul.bf16.gmra.mxu0 %v323
  %v416 = vpop.f32.mrf.mxu0
  %v417 = vadd.f32 %v347, %v416
  %v418 = vpop.f32.mrf.mxu0
  %v419 = vadd.f32 %v347, %v418
  %420 = vmatmul.bf16.gmra.mxu0 %v324
  %v421 = vpop.f32.mrf.mxu0
  %v422 = vadd.f32 %v347, %v421
  %v423 = vpop.f32.mrf.mxu0
  %v424 = vadd.f32 %v347, %v423
  %425 = vmatmul.bf16.gmra.mxu0 %v325
  %v426 = vpop.f32.mrf.mxu0
  %v427 = vadd.f32 %v347, %v426
  %v428 = vpop.f32.mrf.mxu0
  %v429 = vadd.f32 %v347, %v428
  %430 = vmatmul.bf16.gmra.mxu0 %v326
  %v431 = vpop.f32.mrf.mxu0
  %v432 = vadd.f32 %v347, %v431
  %v433 = vpop.f32.mrf.mxu0
  %v434 = vadd.f32 %v347, %v433
  %435 = vmatmul.bf16.gmra.mxu0 %v327
  %v436 = vpop.f32.mrf.mxu0
  %v437 = vadd.f32 %v347, %v436
  %v438 = vpop.f32.mrf.mxu0
  %v439 = vadd.f32 %v347, %v438
  %440 = vmatmul.bf16.gmra.mxu0 %v328
  %v441 = vpop.f32.mrf.mxu0
  %v442 = vadd.f32 %v347, %v441
  %v443 = vpop.f32.mrf.mxu0
  %v444 = vadd.f32 %v347, %v443
  %445 = vdwg.mxu0
  %v446 = vmax.f32 %v407, 0.0
  %v447 = vmax.f32 %v409, 0.0
  %v448 = vmax.f32 %v412, 0.0
  %v449 = vmax.f32 %v414, 0.0
  %v450 = vmax.f32 %v417, 0.0
  %v451 = vmax.f32 %v419, 0.0
  %v452 = vmax.f32 %v422, 0.0
  %v453 = vmax.f32 %v424, 0.0
  %v454 = vmax.f32 %v427, 0.0
  %v455 = vmax.f32 %v429, 0.0
  %v456 = vmax.f32 %v432, 0.0
  %v457 = vmax.f32 %v434, 0.0
  %v458 = vmax.f32 %v437, 0.0
  %v459 = vmax.f32 %v439, 0.0
  %v460 = vmax.f32 %v442, 0.0
  %v461 = vmax.f32 %v444, 0.0
  %v462 = vpack.c.bf16 %v447, %v446
  %v463 = vpack.c.bf16 %v449, %v448
  %v464 = vpack.c.bf16 %v451, %v450
  %v465 = vpack.c.bf16 %v453, %v452
  %v466 = vpack.c.bf16 %v455, %v454
  %v467 = vpack.c.bf16 %v457, %v456
  %v468 = vpack.c.bf16 %v459, %v458
  %v469 = vpack.c.bf16 %v461, %v460
  %v470 = vld [vmem:[%s5] sm:$0xf]
  %v471 = vld [vmem:[%s5 + $0x4] sm:$0xf]
  %v474 = vunpack.c.l.b16 %v470
  %v475 = vunpack.c.l.b16 %v471
  %v476 = vpack.c.b16 %v475, %v474
  %478 = vmatpush.bf16.xpose.msra.mxu0 %v469
  %479 = vmatpush.bf16.xpose.msra.mxu0 %v468
  %480 = vmatpush.bf16.xpose.msra.mxu0 %v467
  %481 = vmatpush.bf16.xpose.msra.mxu0 %v466
  %482 = vmatpush.bf16.xpose.msra.mxu0 %v465
  %483 = vmatpush.bf16.xpose.msra.mxu0 %v464
  %484 = vmatpush.bf16.xpose.msra.mxu0 %v463
  %485 = vmatpush.bf16.xpose.msra.mxu0 %v462
  %486 = vmatmul.bf16.gmra.mxu0 %v476
  %v487 = vpop.f32.mrf.mxu0
  %v488 = vadd.f32 0.0, %v487
  %v489 = vpop.f32.mrf.mxu0
  %490 = vdwg.mxu0
  %s491 = sld [smem:[#allocation2]]
  %v492 = vstv %s491
  %v493 = vadd.f32 %v488, %v492
  %494 = vst [vmem:[%s7] sm:$0x1] %v493
  // Predicated region
  $region30: #{mol_pred_dnn_forward.1} parent=0 // pred_check
    _
  $region31: #{mol_pred_dnn_forward.1} parent=0 // pred_check_branch
    %496 = sbr.rel (0) target = $region33
  $region32: #{mol_pred_dnn_forward.1} parent=0 // pred_region
    _
  $region33: #{mol_pred_dnn_forward.1} parent=0 // pred_fallthru
    _
  // Predicated region
  $region34: #{mol_pred_dnn_forward.1} parent=0 // pred_check
    _
  $region35: #{mol_pred_dnn_forward.1} parent=0 // pred_check_branch
    %498 = sbr.rel (0) target = $region37
  $region36: #{mol_pred_dnn_forward.1} parent=0 // pred_region
    _
  $region37: #{mol_pred_dnn_forward.1} parent=0 // pred_fallthru
    _

// kernel: mol_pred_dnn_forward.1
$region0: #{mol_pred_dnn_forward.1}
  #allocation0 [shape = 'u32[]', space=smem, size = 0x4, offset = 0x4, fixed_abs, tag = 'smem constant byte address 0x4 - core index']
  #allocation1 [shape = 'u32[72,128]{1,0:T(1,128)}', space=vmem, size = 0x9000, scoped, tag = 'internal scratch']
  #allocation2 [shape = 'f32[1,1]{1,0:T(1,128)S(6)}', space=smem, size = 0x200, scoped, tag = 'scoped memory for mol_pred_dnn_forward.1']
  %s0 = inlined_call_operand.vmem [shape: f32[128,256], index: 0, kind: input, shape index: {}]
  %s1 = inlined_call_operand.vmem [shape: bf16[256,128], index: 1, kind: input, shape index: {}]
  %s2 = inlined_call_operand.vmem [shape: f32[1,128], index: 2, kind: input, shape index: {}]
  %s3 = inlined_call_operand.vmem [shape: bf16[128,128], index: 3, kind: input, shape index: {}]
  %s4 = inlined_call_operand.vmem [shape: f32[1,128], index: 4, kind: input, shape index: {}]
  %s5 = inlined_call_operand.vmem [shape: bf16[16,128], index: 5, kind: input, shape index: {}]
  %s6 = inlined_call_operand.<no memory space> [shape: f32[1,1], index: 6, kind: input, shape index: {}]
  %s7 = inlined_call_operand.vmem [shape: f32[1,1,128], index: 7, kind: output, shape index: {}]
  %s8 = sld [smem:[#allocation0]]
  $region38: #{mol_pred_dnn_forward.1} parent=0
    _
  %s10 = ssub.s32 1, %s8
  %s11 = scalar_select 0, %s10, %s8
  %12 = sst [smem:[#allocation2]] %s6
  // Predicated region
  $region2: #{mol_pred_dnn_forward.1} parent=0 // pred_check
    _
  $region3: #{mol_pred_dnn_forward.1} parent=0 // pred_check_branch
    %14 = sbr.rel (0) target = $region5
  $region4: #{mol_pred_dnn_forward.1} parent=0 // pred_region
    _
  $region5: #{mol_pred_dnn_forward.1} parent=0 // pred_fallthru
    _
  // Predicated region
  $region6: #{mol_pred_dnn_forward.1} parent=0 // pred_check
    _
  $region7: #{mol_pred_dnn_forward.1} parent=0 // pred_check_branch
    %16 = sbr.rel (0) target = $region9
  $region8: #{mol_pred_dnn_forward.1} parent=0 // pred_region
    _
  $region9: #{mol_pred_dnn_forward.1} parent=0 // pred_fallthru
    _
  // Predicated region
  $region10: #{mol_pred_dnn_forward.1} parent=0 // pred_check
    _
  $region11: #{mol_pred_dnn_forward.1} parent=0 // pred_check_branch
    %18 = sbr.rel (0) target = $region13
  $region12: #{mol_pred_dnn_forward.1} parent=0 // pred_region
    _
  $region13: #{mol_pred_dnn_forward.1} parent=0 // pred_fallthru
    _
  // Predicated region
  $region14: #{mol_pred_dnn_forward.1} parent=0 // pred_check
    _
  $region15: #{mol_pred_dnn_forward.1} parent=0 // pred_check_branch
    %20 = sbr.rel (0) target = $region17
  $region16: #{mol_pred_dnn_forward.1} parent=0 // pred_region
    _
  $region17: #{mol_pred_dnn_forward.1} parent=0 // pred_fallthru
    _
  // Predicated region
  $region18: #{mol_pred_dnn_forward.1} parent=0 // pred_check
    _
  $region19: #{mol_pred_dnn_forward.1} parent=0 // pred_check_branch
    %22 = sbr.rel (0) target = $region21
  $region20: #{mol_pred_dnn_forward.1} parent=0 // pred_region
    _
  $region21: #{mol_pred_dnn_forward.1} parent=0 // pred_fallthru
    _
  // Predicated region
  $region22: #{mol_pred_dnn_forward.1} parent=0 // pred_check
    _
  $region23: #{mol_pred_dnn_forward.1} parent=0 // pred_check_branch
    %24 = sbr.rel (0) target = $region25
  $region24: #{mol_pred_dnn_forward.1} parent=0 // pred_region
    _
  $region25: #{mol_pred_dnn_forward.1} parent=0 // pred_fallthru
    _
  // Predicated region
  $region26: #{mol_pred_dnn_forward.1} parent=0 // pred_check
    _
  $region27: #{mol_pred_dnn_forward.1} parent=0 // pred_check_branch
    %26 = sbr.rel (0) target = $region29
  $region28: #{mol_pred_dnn_forward.1} parent=0 // pred_region
    _
  $region29: #{mol_pred_dnn_forward.1} parent=0 // pred_fallthru
    _
  %v27 = vld [vmem:[%s0] sm:$0xff]
  %v28 = vld [vmem:[%s0 + $0x8] sm:$0xff]
  %v29 = vld [vmem:[%s0 + $0x10] sm:$0xff]
  %v30 = vld [vmem:[%s0 + $0x18] sm:$0xff]
  %v31 = vld [vmem:[%s0 + $0x20] sm:$0xff]
  %v32 = vld [vmem:[%s0 + $0x28] sm:$0xff]
  %v33 = vld [vmem:[%s0 + $0x30] sm:$0xff]
  %v34 = vld [vmem:[%s0 + $0x38] sm:$0xff]
  %v35 = vld [vmem:[%s0 + $0x40] sm:$0xff]
  %v36 = vld [vmem:[%s0 + $0x48] sm:$0xff]
  %v37 = vld [vmem:[%s0 + $0x50] sm:$0xff]
  %v38 = vld [vmem:[%s0 + $0x58] sm:$0xff]
  %v39 = vld [vmem:[%s0 + $0x60] sm:$0xff]
  %v40 = vld [vmem:[%s0 + $0x68] sm:$0xff]
  %v41 = vld [vmem:[%s0 + $0x70] sm:$0xff]
  %v42 = vld [vmem:[%s0 + $0x78] sm:$0xff]
  %v43 = vld [vmem:[%s0 + $0x80] sm:$0xff]
  %v44 = vld [vmem:[%s0 + $0x88] sm:$0xff]
  %v45 = vld [vmem:[%s0 + $0x90] sm:$0xff]
  %v46 = vld [vmem:[%s0 + $0x98] sm:$0xff]
  %v47 = vld [vmem:[%s0 + $0xa0] sm:$0xff]
  %v48 = vld [vmem:[%s0 + $0xa8] sm:$0xff]
  %v49 = vld [vmem:[%s0 + $0xb0] sm:$0xff]
  %v50 = vld [vmem:[%s0 + $0xb8] sm:$0xff]
  %v51 = vld [vmem:[%s0 + $0xc0] sm:$0xff]
  %v52 = vld [vmem:[%s0 + $0xc8] sm:$0xff]
  %v53 = vld [vmem:[%s0 + $0xd0] sm:$0xff]
  %v54 = vld [vmem:[%s0 + $0xd8] sm:$0xff]
  %v55 = vld [vmem:[%s0 + $0xe0] sm:$0xff]
  %v56 = vld [vmem:[%s0 + $0xe8] sm:$0xff]
  %v57 = vld [vmem:[%s0 + $0xf0] sm:$0xff]
  %v58 = vld [vmem:[%s0 + $0xf8] sm:$0xff]
  %v59 = vpack.c.bf16 %v29, %v27
  %v60 = vpack.c.bf16 %v30, %v28
  %v61 = vpack.c.bf16 %v33, %v31
  %v62 = vpack.c.bf16 %v34, %v32
  %v63 = vpack.c.bf16 %v37, %v35
  %v64 = vpack.c.bf16 %v38, %v36
  %v65 = vpack.c.bf16 %v41, %v39
  %v66 = vpack.c.bf16 %v42, %v40
  %v67 = vpack.c.bf16 %v45, %v43
  %v68 = vpack.c.bf16 %v46, %v44
  %v69 = vpack.c.bf16 %v49, %v47
  %v70 = vpack.c.bf16 %v50, %v48
  %v71 = vpack.c.bf16 %v53, %v51
  %v72 = vpack.c.bf16 %v54, %v52
  %v73 = vpack.c.bf16 %v57, %v55
  %v74 = vpack.c.bf16 %v58, %v56
  %v75 = vld [vmem:[%s1] sm:$0xf]
  %v76 = vld [vmem:[%s1 + $0x4] sm:$0xf]
  %v77 = vld [vmem:[%s1 + $0x8] sm:$0xf]
  %v78 = vld [vmem:[%s1 + $0xc] sm:$0xf]
  %v79 = vld [vmem:[%s1 + $0x10] sm:$0xf]
  %v80 = vld [vmem:[%s1 + $0x14] sm:$0xf]
  %v81 = vld [vmem:[%s1 + $0x18] sm:$0xf]
  %v82 = vld [vmem:[%s1 + $0x1c] sm:$0xf]
  %v83 = vld [vmem:[%s1 + $0x20] sm:$0xf]
  %v84 = vld [vmem:[%s1 + $0x24] sm:$0xf]
  %v85 = vld [vmem:[%s1 + $0x28] sm:$0xf]
  %v86 = vld [vmem:[%s1 + $0x2c] sm:$0xf]
  %v87 = vld [vmem:[%s1 + $0x30] sm:$0xf]
  %v88 = vld [vmem:[%s1 + $0x34] sm:$0xf]
  %v89 = vld [vmem:[%s1 + $0x38] sm:$0xf]
  %v90 = vld [vmem:[%s1 + $0x3c] sm:$0xf]
  %v91 = vld [vmem:[%s1 + $0x40] sm:$0xf]
  %v92 = vld [vmem:[%s1 + $0x44] sm:$0xf]
  %v93 = vld [vmem:[%s1 + $0x48] sm:$0xf]
  %v94 = vld [vmem:[%s1 + $0x4c] sm:$0xf]
  %v95 = vld [vmem:[%s1 + $0x50] sm:$0xf]
  %v96 = vld [vmem:[%s1 + $0x54] sm:$0xf]
  %v97 = vld [vmem:[%s1 + $0x58] sm:$0xf]
  %v98 = vld [vmem:[%s1 + $0x5c] sm:$0xf]
  %v99 = vld [vmem:[%s1 + $0x60] sm:$0xf]
  %v100 = vld [vmem:[%s1 + $0x64] sm:$0xf]
  %v101 = vld [vmem:[%s1 + $0x68] sm:$0xf]
  %v102 = vld [vmem:[%s1 + $0x6c] sm:$0xf]
  %v103 = vld [vmem:[%s1 + $0x70] sm:$0xf]
  %v104 = vld [vmem:[%s1 + $0x74] sm:$0xf]
  %v105 = vld [vmem:[%s1 + $0x78] sm:$0xf]
  %v106 = vld [vmem:[%s1 + $0x7c] sm:$0xf]
  %v107 = vld [vmem:[%s2] sm:$0x1]
  %v109 = vperm.slane %v107, 0
  %v143 = vunpack.c.l.b16 %v75
  %v144 = vunpack.c.l.b16 %v76
  %v145 = vunpack.c.l.b16 %v77
  %v146 = vunpack.c.l.b16 %v78
  %v147 = vunpack.c.l.b16 %v79
  %v148 = vunpack.c.l.b16 %v80
  %v149 = vunpack.c.l.b16 %v81
  %v150 = vunpack.c.l.b16 %v82
  %v151 = vunpack.c.l.b16 %v83
  %v152 = vunpack.c.l.b16 %v84
  %v153 = vunpack.c.l.b16 %v85
  %v154 = vunpack.c.l.b16 %v86
  %v155 = vunpack.c.l.b16 %v87
  %v156 = vunpack.c.l.b16 %v88
  %v157 = vunpack.c.l.b16 %v89
  %v158 = vunpack.c.l.b16 %v90
  %v159 = vunpack.c.l.b16 %v91
  %v160 = vunpack.c.l.b16 %v92
  %v161 = vunpack.c.l.b16 %v93
  %v162 = vunpack.c.l.b16 %v94
  %v163 = vunpack.c.l.b16 %v95
  %v164 = vunpack.c.l.b16 %v96
  %v165 = vunpack.c.l.b16 %v97
  %v166 = vunpack.c.l.b16 %v98
  %v167 = vunpack.c.l.b16 %v99
  %v168 = vunpack.c.l.b16 %v100
  %v169 = vunpack.c.l.b16 %v101
  %v170 = vunpack.c.l.b16 %v102
  %v171 = vunpack.c.l.b16 %v103
  %v172 = vunpack.c.l.b16 %v104
  %v173 = vunpack.c.l.b16 %v105
  %v174 = vunpack.c.l.b16 %v106
  %v175 = vpack.c.b16 %v144, %v143
  %v176 = vpack.c.b16 %v146, %v145
  %v177 = vpack.c.b16 %v148, %v147
  %v178 = vpack.c.b16 %v150, %v149
  %v179 = vpack.c.b16 %v152, %v151
  %v180 = vpack.c.b16 %v154, %v153
  %v181 = vpack.c.b16 %v156, %v155
  %v182 = vpack.c.b16 %v158, %v157
  %v183 = vpack.c.b16 %v160, %v159
  %v184 = vpack.c.b16 %v162, %v161
  %v185 = vpack.c.b16 %v164, %v163
  %v186 = vpack.c.b16 %v166, %v165
  %v187 = vpack.c.b16 %v168, %v167
  %v188 = vpack.c.b16 %v170, %v169
  %v189 = vpack.c.b16 %v172, %v171
  %v190 = vpack.c.b16 %v174, %v173
  %207 = vmatpush.bf16.msra.mxu0 %v182
  %208 = vmatpush.bf16.msra.mxu0 %v181
  %209 = vmatpush.bf16.msra.mxu0 %v180
  %210 = vmatpush.bf16.msra.mxu0 %v179
  %211 = vmatpush.bf16.msra.mxu0 %v178
  %212 = vmatpush.bf16.msra.mxu0 %v177
  %213 = vmatpush.bf16.msra.mxu0 %v176
  %214 = vmatpush.bf16.msra.mxu0 %v175
  %215 = vmatmul.bf16.gmra.mxu0 %v59
  %v216 = vpop.f32.mrf.mxu0
  %v217 = vadd.f32 %v109, %v216
  %v218 = vpop.f32.mrf.mxu0
  %v219 = vadd.f32 %v109, %v218
  %220 = vmatmul.bf16.gmra.mxu0 %v61
  %v221 = vpop.f32.mrf.mxu0
  %v222 = vadd.f32 %v109, %v221
  %v223 = vpop.f32.mrf.mxu0
  %v224 = vadd.f32 %v109, %v223
  %225 = vmatmul.bf16.gmra.mxu0 %v63
  %v226 = vpop.f32.mrf.mxu0
  %v227 = vadd.f32 %v109, %v226
  %v228 = vpop.f32.mrf.mxu0
  %v229 = vadd.f32 %v109, %v228
  %230 = vmatmul.bf16.gmra.mxu0 %v65
  %v231 = vpop.f32.mrf.mxu0
  %v232 = vadd.f32 %v109, %v231
  %v233 = vpop.f32.mrf.mxu0
  %v234 = vadd.f32 %v109, %v233
  %235 = vmatmul.bf16.gmra.mxu0 %v67
  %v236 = vpop.f32.mrf.mxu0
  %v237 = vadd.f32 %v109, %v236
  %v238 = vpop.f32.mrf.mxu0
  %v239 = vadd.f32 %v109, %v238
  %240 = vmatmul.bf16.gmra.mxu0 %v69
  %v241 = vpop.f32.mrf.mxu0
  %v242 = vadd.f32 %v109, %v241
  %v243 = vpop.f32.mrf.mxu0
  %v244 = vadd.f32 %v109, %v243
  %245 = vmatmul.bf16.gmra.mxu0 %v71
  %v246 = vpop.f32.mrf.mxu0
  %v247 = vadd.f32 %v109, %v246
  %v248 = vpop.f32.mrf.mxu0
  %v249 = vadd.f32 %v109, %v248
  %250 = vmatmul.bf16.gmra.mxu0 %v73
  %v251 = vpop.f32.mrf.mxu0
  %v252 = vadd.f32 %v109, %v251
  %v253 = vpop.f32.mrf.mxu0
  %v254 = vadd.f32 %v109, %v253
  %255 = vdwg.mxu0
  %256 = vmatpush.bf16.msra.mxu0 %v190
  %257 = vmatpush.bf16.msra.mxu0 %v189
  %258 = vmatpush.bf16.msra.mxu0 %v188
  %259 = vmatpush.bf16.msra.mxu0 %v187
  %260 = vmatpush.bf16.msra.mxu0 %v186
  %261 = vmatpush.bf16.msra.mxu0 %v185
  %262 = vmatpush.bf16.msra.mxu0 %v184
  %263 = vmatpush.bf16.msra.mxu0 %v183
  %264 = vmatmul.bf16.gmra.mxu0 %v60
  %v265 = vpop.f32.mrf.mxu0
  %v266 = vadd.f32 %v217, %v265
  %v267 = vpop.f32.mrf.mxu0
  %v268 = vadd.f32 %v219, %v267
  %269 = vmatmul.bf16.gmra.mxu0 %v62
  %v270 = vpop.f32.mrf.mxu0
  %v271 = vadd.f32 %v222, %v270
  %v272 = vpop.f32.mrf.mxu0
  %v273 = vadd.f32 %v224, %v272
  %274 = vmatmul.bf16.gmra.mxu0 %v64
  %v275 = vpop.f32.mrf.mxu0
  %v276 = vadd.f32 %v227, %v275
  %v277 = vpop.f32.mrf.mxu0
  %v278 = vadd.f32 %v229, %v277
  %279 = vmatmul.bf16.gmra.mxu0 %v66
  %v280 = vpop.f32.mrf.mxu0
  %v281 = vadd.f32 %v232, %v280
  %v282 = vpop.f32.mrf.mxu0
  %v283 = vadd.f32 %v234, %v282
  %284 = vmatmul.bf16.gmra.mxu0 %v68
  %v285 = vpop.f32.mrf.mxu0
  %v286 = vadd.f32 %v237, %v285
  %v287 = vpop.f32.mrf.mxu0
  %v288 = vadd.f32 %v239, %v287
  %289 = vmatmul.bf16.gmra.mxu0 %v70
  %v290 = vpop.f32.mrf.mxu0
  %v291 = vadd.f32 %v242, %v290
  %v292 = vpop.f32.mrf.mxu0
  %v293 = vadd.f32 %v244, %v292
  %294 = vmatmul.bf16.gmra.mxu0 %v72
  %v295 = vpop.f32.mrf.mxu0
  %v296 = vadd.f32 %v247, %v295
  %v297 = vpop.f32.mrf.mxu0
  %v298 = vadd.f32 %v249, %v297
  %299 = vmatmul.bf16.gmra.mxu0 %v74
  %v300 = vpop.f32.mrf.mxu0
  %v301 = vadd.f32 %v252, %v300
  %v302 = vpop.f32.mrf.mxu0
  %v303 = vadd.f32 %v254, %v302
  %304 = vdwg.mxu0
  %v305 = vmax.f32 %v266, 0.0
  %v306 = vmax.f32 %v268, 0.0
  %v307 = vmax.f32 %v271, 0.0
  %v308 = vmax.f32 %v273, 0.0
  %v309 = vmax.f32 %v276, 0.0
  %v310 = vmax.f32 %v278, 0.0
  %v311 = vmax.f32 %v281, 0.0
  %v312 = vmax.f32 %v283, 0.0
  %v313 = vmax.f32 %v286, 0.0
  %v314 = vmax.f32 %v288, 0.0
  %v315 = vmax.f32 %v291, 0.0
  %v316 = vmax.f32 %v293, 0.0
  %v317 = vmax.f32 %v296, 0.0
  %v318 = vmax.f32 %v298, 0.0
  %v319 = vmax.f32 %v301, 0.0
  %v320 = vmax.f32 %v303, 0.0
  %v321 = vpack.c.bf16 %v306, %v305
  %v322 = vpack.c.bf16 %v308, %v307
  %v323 = vpack.c.bf16 %v310, %v309
  %v324 = vpack.c.bf16 %v312, %v311
  %v325 = vpack.c.bf16 %v314, %v313
  %v326 = vpack.c.bf16 %v316, %v315
  %v327 = vpack.c.bf16 %v318, %v317
  %v328 = vpack.c.bf16 %v320, %v319
  %v329 = vld [vmem:[%s3] sm:$0xf]
  %v330 = vld [vmem:[%s3 + $0x4] sm:$0xf]
  %v331 = vld [vmem:[%s3 + $0x8] sm:$0xf]
  %v332 = vld [vmem:[%s3 + $0xc] sm:$0xf]
  %v333 = vld [vmem:[%s3 + $0x10] sm:$0xf]
  %v334 = vld [vmem:[%s3 + $0x14] sm:$0xf]
  %v335 = vld [vmem:[%s3 + $0x18] sm:$0xf]
  %v336 = vld [vmem:[%s3 + $0x1c] sm:$0xf]
  %v337 = vld [vmem:[%s3 + $0x20] sm:$0xf]
  %v338 = vld [vmem:[%s3 + $0x24] sm:$0xf]
  %v339 = vld [vmem:[%s3 + $0x28] sm:$0xf]
  %v340 = vld [vmem:[%s3 + $0x2c] sm:$0xf]
  %v341 = vld [vmem:[%s3 + $0x30] sm:$0xf]
  %v342 = vld [vmem:[%s3 + $0x34] sm:$0xf]
  %v343 = vld [vmem:[%s3 + $0x38] sm:$0xf]
  %v344 = vld [vmem:[%s3 + $0x3c] sm:$0xf]
  %v345 = vld [vmem:[%s4] sm:$0x1]
  %v347 = vperm.slane %v345, 0
  %v365 = vunpack.c.l.b16 %v329
  %v366 = vunpack.c.l.b16 %v330
  %v367 = vunpack.c.l.b16 %v331
  %v368 = vunpack.c.l.b16 %v332
  %v369 = vunpack.c.l.b16 %v333
  %v370 = vunpack.c.l.b16 %v334
  %v371 = vunpack.c.l.b16 %v335
  %v372 = vunpack.c.l.b16 %v336
  %v373 = vunpack.c.l.b16 %v337
  %v374 = vunpack.c.l.b16 %v338
  %v375 = vunpack.c.l.b16 %v339
  %v376 = vunpack.c.l.b16 %v340
  %v377 = vunpack.c.l.b16 %v341
  %v378 = vunpack.c.l.b16 %v342
  %v379 = vunpack.c.l.b16 %v343
  %v380 = vunpack.c.l.b16 %v344
  %v381 = vpack.c.b16 %v366, %v365
  %v382 = vpack.c.b16 %v368, %v367
  %v383 = vpack.c.b16 %v370, %v369
  %v384 = vpack.c.b16 %v372, %v371
  %v385 = vpack.c.b16 %v374, %v373
  %v386 = vpack.c.b16 %v376, %v375
  %v387 = vpack.c.b16 %v378, %v377
  %v388 = vpack.c.b16 %v380, %v379
  %397 = vmatpush.bf16.msra.mxu0 %v388
  %398 = vmatpush.bf16.msra.mxu0 %v387
  %399 = vmatpush.bf16.msra.mxu0 %v386
  %400 = vmatpush.bf16.msra.mxu0 %v385
  %401 = vmatpush.bf16.msra.mxu0 %v384
  %402 = vmatpush.bf16.msra.mxu0 %v383
  %403 = vmatpush.bf16.msra.mxu0 %v382
  %404 = vmatpush.bf16.msra.mxu0 %v381
  %405 = vmatmul.bf16.gmra.mxu0 %v321
  %v406 = vpop.f32.mrf.mxu0
  %v407 = vadd.f32 %v347, %v406
  %v408 = vpop.f32.mrf.mxu0
  %v409 = vadd.f32 %v347, %v408
  %410 = vmatmul.bf16.gmra.mxu0 %v322
  %v411 = vpop.f32.mrf.mxu0
  %v412 = vadd.f32 %v347, %v411
  %v413 = vpop.f32.mrf.mxu0
  %v414 = vadd.f32 %v347, %v413
  %415 = vmatmul.bf16.gmra.mxu0 %v323
  %v416 = vpop.f32.mrf.mxu0
  %v417 = vadd.f32 %v347, %v416
  %v418 = vpop.f32.mrf.mxu0
  %v419 = vadd.f32 %v347, %v418
  %420 = vmatmul.bf16.gmra.mxu0 %v324
  %v421 = vpop.f32.mrf.mxu0
  %v422 = vadd.f32 %v347, %v421
  %v423 = vpop.f32.mrf.mxu0
  %v424 = vadd.f32 %v347, %v423
  %425 = vmatmul.bf16.gmra.mxu0 %v325
  %v426 = vpop.f32.mrf.mxu0
  %v427 = vadd.f32 %v347, %v426
  %v428 = vpop.f32.mrf.mxu0
  %v429 = vadd.f32 %v347, %v428
  %430 = vmatmul.bf16.gmra.mxu0 %v326
  %v431 = vpop.f32.mrf.mxu0
  %v432 = vadd.f32 %v347, %v431
  %v433 = vpop.f32.mrf.mxu0
  %v434 = vadd.f32 %v347, %v433
  %435 = vmatmul.bf16.gmra.mxu0 %v327
  %v436 = vpop.f32.mrf.mxu0
  %v437 = vadd.f32 %v347, %v436
  %v438 = vpop.f32.mrf.mxu0
  %v439 = vadd.f32 %v347, %v438
  %440 = vmatmul.bf16.gmra.mxu0 %v328
  %v441 = vpop.f32.mrf.mxu0
  %v442 = vadd.f32 %v347, %v441
  %v443 = vpop.f32.mrf.mxu0
  %v444 = vadd.f32 %v347, %v443
  %445 = vdwg.mxu0
  %v446 = vmax.f32 %v407, 0.0
  %v447 = vmax.f32 %v409, 0.0
  %v448 = vmax.f32 %v412, 0.0
  %v449 = vmax.f32 %v414, 0.0
  %v450 = vmax.f32 %v417, 0.0
  %v451 = vmax.f32 %v419, 0.0
  %v452 = vmax.f32 %v422, 0.0
  %v453 = vmax.f32 %v424, 0.0
  %v454 = vmax.f32 %v427, 0.0
  %v455 = vmax.f32 %v429, 0.0
  %v456 = vmax.f32 %v432, 0.0
  %v457 = vmax.f32 %v434, 0.0
  %v458 = vmax.f32 %v437, 0.0
  %v459 = vmax.f32 %v439, 0.0
  %v460 = vmax.f32 %v442, 0.0
  %v461 = vmax.f32 %v444, 0.0
  %v462 = vpack.c.bf16 %v447, %v446
  %v463 = vpack.c.bf16 %v449, %v448
  %v464 = vpack.c.bf16 %v451, %v450
  %v465 = vpack.c.bf16 %v453, %v452
  %v466 = vpack.c.bf16 %v455, %v454
  %v467 = vpack.c.bf16 %v457, %v456
  %v468 = vpack.c.bf16 %v459, %v458
  %v469 = vpack.c.bf16 %v461, %v460
  %v470 = vld [vmem:[%s5] sm:$0xf]
  %v471 = vld [vmem:[%s5 + $0x4] sm:$0xf]
  %v474 = vunpack.c.l.b16 %v470
  %v475 = vunpack.c.l.b16 %v471
  %v476 = vpack.c.b16 %v475, %v474
  %478 = vmatpush.bf16.xpose.msra.mxu0 %v469
  %479 = vmatpush.bf16.xpose.msra.mxu0 %v468
  %480 = vmatpush.bf16.xpose.msra.mxu0 %v467
  %481 = vmatpush.bf16.xpose.msra.mxu0 %v466
  %482 = vmatpush.bf16.xpose.msra.mxu0 %v465
  %483 = vmatpush.bf16.xpose.msra.mxu0 %v464
  %484 = vmatpush.bf16.xpose.msra.mxu0 %v463
  %485 = vmatpush.bf16.xpose.msra.mxu0 %v462
  %486 = vmatmul.bf16.gmra.mxu0 %v476
  %v487 = vpop.f32.mrf.mxu0
  %v488 = vadd.f32 0.0, %v487
  %v489 = vpop.f32.mrf.mxu0
  %490 = vdwg.mxu0
  %s491 = sld [smem:[#allocation2]]
  %v492 = vstv %s491
  %v493 = vadd.f32 %v488, %v492
  %494 = vst [vmem:[%s7] sm:$0x1] %v493
  // Predicated region
  $region30: #{mol_pred_dnn_forward.1} parent=0 // pred_check
    _
  $region31: #{mol_pred_dnn_forward.1} parent=0 // pred_check_branch
    %496 = sbr.rel (0) target = $region33
  $region32: #{mol_pred_dnn_forward.1} parent=0 // pred_region
    _
  $region33: #{mol_pred_dnn_forward.1} parent=0 // pred_fallthru
    _
  // Predicated region
  $region34: #{mol_pred_dnn_forward.1} parent=0 // pred_check
    _
  $region35: #{mol_pred_dnn_forward.1} parent=0 // pred_check_branch
    %498 = sbr.rel (0) target = $region37
  $region36: #{mol_pred_dnn_forward.1} parent=0 // pred_region
    _
  $region37: #{mol_pred_dnn_forward.1} parent=0 // pred_fallthru
    _

</llo_original>
